<compile_context>
chip_gen: v5e
topology: v5e:2x2
jax: 0.10.0
libtpu: 0.0.40
codegen_flags: <defaults>
</compile_context>

<pallas_src>
import math

import jax
import jax.numpy as jnp
from jax.experimental import pallas as pl
from jax.experimental.pallas import tpu as pltpu


def _round_up(x, m):
    return ((x + m - 1) // m) * m


def _gaussian_linear_kernel(w_scale_ref, b_scale_ref, x_ref, eps_w_ref,
                            eps_b_ref, o_ref):
    k = pl.program_id(2)

    # Hot path: MXU matmul in the input dtype with f32 accumulation, summed
    # straight into the VMEM-resident f32 output block.
    part = jnp.dot(x_ref[...], eps_w_ref[...],
                   preferred_element_type=jnp.float32)

    @pl.when(k == 0)
    def _first():
        o_ref[...] = part                 # write-on-first-k (no zero-init pass)

    @pl.when(k > 0)
    def _accum():
        o_ref[...] += part

    @pl.when(k == pl.num_programs(2) - 1)
    def _finalize():
        # out = softplus(W_std)/sqrt(n_in) * (X @ eps_W) + softplus(b_std) * eps_b
        bias = b_scale_ref[0] * eps_b_ref[...]        # (1, tn) f32, broadcasts
        o_ref[...] = w_scale_ref[0] * o_ref[...] + bias


def gaussian_linear_reparam_forward(x, eps_w, eps_b, w_std, b_std,
                                    *, scaled_variance=True):
    """x: [B, n_in]; eps_w: [n_in, n_out]; eps_b: [1, n_out];
    w_std / b_std: layer-wide scalar std parameters (prior_per='layer')."""
    batch, n_in = x.shape
    n_out = eps_w.shape[1]

    # --- scalar reparameterization factors, hoisted out of the kernel ------
    w_scale = jax.nn.softplus(jnp.asarray(w_std, jnp.float32).reshape(()))
    if scaled_variance:
        w_scale = w_scale / math.sqrt(n_in)
    b_scale = jax.nn.softplus(jnp.asarray(b_std, jnp.float32).reshape(()))
    w_scale = w_scale.reshape(1)
    b_scale = b_scale.reshape(1)

    # --- generation-aware tile selection ------------------------------------
    # Worst-case f32 double-buffered working set at the caps:
    #   X 2x2 MiB + eps_W 2x8 MiB + out 2x1 MiB ~= 22 MiB  << 48 MiB limit.
    TM_CAP, TK_CAP, TN_CAP = 256, 2048, 1024

    def _tile(dim, cap):
        # Full-extent block when it fits (no padding; block == full dim),
        # otherwise the lane/sublane-aligned cap.
        return dim if dim <= cap else cap

    tm = _tile(batch, TM_CAP)
    tk = _tile(n_in, TK_CAP)
    tn = _tile(n_out, TN_CAP)

    # Megacore (v7x has 2 TensorCores): if the natural grid has a single (M,N)
    # block, split N (or M) in two when it divides cleanly so both cores get a
    # "parallel" block without introducing any padding.
    if batch <= tm and n_out <= tn:
        if n_out >= 256 and n_out % 256 == 0:
            tn = n_out // 2
        elif batch >= 16 and batch % 16 == 0:
            tm = batch // 2

    m_pad = _round_up(batch, tm)
    k_pad = _round_up(n_in, tk)
    n_pad = _round_up(n_out, tn)
    pm, pk, pn = m_pad - batch, k_pad - n_in, n_pad - n_out

    # Pad only when a dimension does not divide its tile (common case: no
    # extra HBM pass over eps_W at all).  Inputs keep their native dtype.
    x_p = x if (pm == 0 and pk == 0) else jnp.pad(x, ((0, pm), (0, pk)))
    eps_w_p = eps_w if (pk == 0 and pn == 0) else jnp.pad(eps_w,
                                                          ((0, pk), (0, pn)))
    eps_b_p = eps_b if pn == 0 else jnp.pad(eps_b, ((0, 0), (0, pn)))

    out_p = pl.pallas_call(
        _gaussian_linear_kernel,
        out_shape=jax.ShapeDtypeStruct((m_pad, n_pad), jnp.float32),
        grid=(m_pad // tm, n_pad // tn, k_pad // tk),
        in_specs=[
            pl.BlockSpec(memory_space=pltpu.MemorySpace.SMEM),  # w_scale scalar
            pl.BlockSpec(memory_space=pltpu.MemorySpace.SMEM),  # b_scale scalar
            pl.BlockSpec((tm, tk), lambda i, j, k: (i, k)),     # X
            # NOTE: if profiling shows exposed DMA in the small-batch regime,
            # pipeline_mode=pl.Buffered(3) on this spec is the next lever.
            pl.BlockSpec((tk, tn), lambda i, j, k: (k, j)),     # eps_W
            pl.BlockSpec((1, tn), lambda i, j, k: (0, j)),      # eps_b
        ],
        # Output index_map ignores k -> block stays VMEM-resident across the
        # reduction axis and is written back to HBM exactly once per (i, j).
        out_specs=pl.BlockSpec((tm, tn), lambda i, j, k: (i, j)),
        compiler_params=pltpu.CompilerParams(
            dimension_semantics=("parallel", "parallel", "arbitrary"),
            vmem_limit_bytes=48 * 1024 * 1024,   # headroom under v7x 64 MiB
        ),
    )(w_scale, b_scale, x_p, eps_w_p, eps_b_p)

    if pm or pn:
        return out_p[:batch, :n_out]
    return out_p


if __name__ == "__main__":
    # Module config (deterministic, in-script): layer-wide prior, scaled variance.
    n_in, n_out = 32, 64
    batch = 8
    W_std_init = 1.0   # scaled_variance=True -> default W_std = 1.0
    b_std_init = 1.0

    key = jax.random.PRNGKey(0)
    kx, kw, kb = jax.random.split(key, 3)

    x = jax.random.normal(kx, (batch, n_in), dtype=jnp.float32)
    eps_w = jax.random.normal(kw, (n_in, n_out), dtype=jnp.float32)
    eps_b = jax.random.normal(kb, (1, n_out), dtype=jnp.float32)

    out = gaussian_linear_reparam_forward(
        x, eps_w, eps_b, W_std_init, b_std_init, scaled_variance=True)
    out = jax.block_until_ready(out)

    # Pure-JAX f32 reference (highest-precision dot).  Tolerance leaves room
    # for the MXU's internal matmul pass precision on f32 operands.
    sp_w = jax.nn.softplus(jnp.float32(W_std_init))
    sp_b = jax.nn.softplus(jnp.float32(b_std_init))
    ref = ((sp_w / math.sqrt(n_in))
           * jnp.dot(x, eps_w, precision=jax.lax.Precision.HIGHEST)
           + sp_b * eps_b)

    assert out.shape == (batch, n_out)
    err = float(jnp.max(jnp.abs(out - ref)))
    assert jnp.allclose(out, ref, atol=1e-2, rtol=1e-2), f"max abs err {err}"

    print("KERNEL_OK")
</pallas_src>

<mosaic_0001>
module attributes {stable_mosaic.version = 11 : i64} {
  func.func @_gaussian_linear_kernel(%arg0: i32, %arg1: i32, %arg2: i32, %arg3: memref<1xf32, #tpu.memory_space<smem>>, %arg4: memref<1xf32, #tpu.memory_space<smem>>, %arg5: memref<8x32xf32, #tpu.memory_space<vmem>>, %arg6: memref<32x64xf32, #tpu.memory_space<vmem>>, %arg7: memref<1x64xf32, #tpu.memory_space<vmem>>, %arg8: memref<8x64xf32, #tpu.memory_space<vmem>>) attributes {dimension_semantics = [#tpu.dimension_semantics<parallel>, #tpu.dimension_semantics<parallel>, #tpu.dimension_semantics<arbitrary>], iteration_bounds = array<i64: 1, 1, 1>, scalar_prefetch = 0 : i64, scratch_operands = 0 : i64, tpu.core_type = #tpu.core_type<tc>, window_params = [{transform_indices = @transform_0, window_bounds = array<i64: 1>}, {transform_indices = @transform_1, window_bounds = array<i64: 1>}, {transform_indices = @transform_2, window_bounds = array<i64: 8, 32>}, {transform_indices = @transform_3, window_bounds = array<i64: 32, 64>}, {transform_indices = @transform_4, window_bounds = array<i64: 1, 64>}, {transform_indices = @transform_5, window_bounds = array<i64: 8, 64>}]} {
    %c0 = arith.constant 0 : index
    %c0_0 = arith.constant 0 : index
    %0 = vector.load %arg5[%c0, %c0_0] : memref<8x32xf32, #tpu.memory_space<vmem>>, vector<8x32xf32>
    %c0_1 = arith.constant 0 : index
    %c0_2 = arith.constant 0 : index
    %1 = vector.load %arg6[%c0_1, %c0_2] : memref<32x64xf32, #tpu.memory_space<vmem>>, vector<32x64xf32>
    %cst = arith.constant dense<0.000000e+00> : vector<8x64xf32>
    %2 = tpu.matmul %0, %1, %cst {dimension_numbers = #tpu.dot_dimension_numbers<[1], [0], [0], [1], [0, 0, 1, 1], [], []>} : vector<8x32xf32>, vector<32x64xf32>, vector<8x64xf32> -> vector<8x64xf32>
    %c0_i32 = arith.constant 0 : i32
    %3 = arith.cmpi eq, %arg2, %c0_i32 : i32
    %4 = arith.extui %3 : i1 to i32
    %c0_i32_3 = arith.constant 0 : i32
    %5 = arith.cmpi ne, %4, %c0_i32_3 : i32
    scf.if %5 {
      %c0_8 = arith.constant 0 : index
      %c0_9 = arith.constant 0 : index
      %12 = vector.load %arg8[%c0_8, %c0_9] : memref<8x64xf32, #tpu.memory_space<vmem>>, vector<8x64xf32>
      tpu.vector_store %arg8[%c0_8, %c0_9], %2 {strides = array<i32>} : memref<8x64xf32, #tpu.memory_space<vmem>>, vector<8x64xf32>,
    } else {
    }
    %c0_i32_4 = arith.constant 0 : i32
    %6 = arith.cmpi sgt, %arg2, %c0_i32_4 : i32
    %7 = arith.extui %6 : i1 to i32
    %c0_i32_5 = arith.constant 0 : i32
    %8 = arith.cmpi ne, %7, %c0_i32_5 : i32
    scf.if %8 {
      %c0_8 = arith.constant 0 : index
      %c0_9 = arith.constant 0 : index
      %12 = vector.load %arg8[%c0_8, %c0_9] : memref<8x64xf32, #tpu.memory_space<vmem>>, vector<8x64xf32>
      %13 = arith.addf %12, %2 : vector<8x64xf32>
      %c0_10 = arith.constant 0 : index
      %c0_11 = arith.constant 0 : index
      %14 = vector.load %arg8[%c0_10, %c0_11] : memref<8x64xf32, #tpu.memory_space<vmem>>, vector<8x64xf32>
      tpu.vector_store %arg8[%c0_10, %c0_11], %13 {strides = array<i32>} : memref<8x64xf32, #tpu.memory_space<vmem>>, vector<8x64xf32>,
    } else {
    }
    %c0_i32_6 = arith.constant 0 : i32
    %9 = arith.cmpi eq, %arg2, %c0_i32_6 : i32
    %10 = arith.extui %9 : i1 to i32
    %c0_i32_7 = arith.constant 0 : i32
    %11 = arith.cmpi ne, %10, %c0_i32_7 : i32
    scf.if %11 {
      %c0_8 = arith.constant 0 : index
      %12 = memref.load %arg4[%c0_8] : memref<1xf32, #tpu.memory_space<smem>>
      %c0_9 = arith.constant 0 : index
      %c0_10 = arith.constant 0 : index
      %13 = vector.load %arg7[%c0_9, %c0_10] : memref<1x64xf32, #tpu.memory_space<vmem>>, vector<1x64xf32>
      %14 = vector.broadcast %12 : f32 to vector<1x64xf32>
      %15 = arith.mulf %14, %13 : vector<1x64xf32>
      %c0_11 = arith.constant 0 : index
      %16 = memref.load %arg3[%c0_11] : memref<1xf32, #tpu.memory_space<smem>>
      %c0_12 = arith.constant 0 : index
      %c0_13 = arith.constant 0 : index
      %17 = vector.load %arg8[%c0_12, %c0_13] : memref<8x64xf32, #tpu.memory_space<vmem>>, vector<8x64xf32>
      %18 = vector.broadcast %16 : f32 to vector<8x64xf32>
      %19 = arith.mulf %18, %17 : vector<8x64xf32>
      %20 = vector.broadcast %15 : vector<1x64xf32> to vector<8x64xf32>
      %21 = arith.addf %19, %20 : vector<8x64xf32>
      %c0_14 = arith.constant 0 : index
      %c0_15 = arith.constant 0 : index
      %22 = vector.load %arg8[%c0_14, %c0_15] : memref<8x64xf32, #tpu.memory_space<vmem>>, vector<8x64xf32>
      tpu.vector_store %arg8[%c0_14, %c0_15], %21 {strides = array<i32>} : memref<8x64xf32, #tpu.memory_space<vmem>>, vector<8x64xf32>,
    } else {
    }
    return
  }
  func.func @transform_0(%arg0: i32, %arg1: i32, %arg2: i32) -> i32 {
    %c0_i32 = arith.constant 0 : i32
    %c0_i32_0 = arith.constant 0 : i32
    return %c0_i32 : i32
  }
  func.func @transform_1(%arg0: i32, %arg1: i32, %arg2: i32) -> i32 {
    %c0_i32 = arith.constant 0 : i32
    %c0_i32_0 = arith.constant 0 : i32
    return %c0_i32 : i32
  }
  func.func @transform_2(%arg0: i32, %arg1: i32, %arg2: i32) -> (i32, i32) {
    %c0_i32 = arith.constant 0 : i32
    return %arg0, %arg2 : i32, i32
  }
  func.func @transform_3(%arg0: i32, %arg1: i32, %arg2: i32) -> (i32, i32) {
    %c0_i32 = arith.constant 0 : i32
    return %arg2, %arg1 : i32, i32
  }
  func.func @transform_4(%arg0: i32, %arg1: i32, %arg2: i32) -> (i32, i32) {
    %c0_i32 = arith.constant 0 : i32
    %c0_i32_0 = arith.constant 0 : i32
    return %c0_i32, %arg1 : i32, i32
  }
  func.func @transform_5(%arg0: i32, %arg1: i32, %arg2: i32) -> (i32, i32) {
    %c0_i32 = arith.constant 0 : i32
    return %arg0, %arg1 : i32, i32
  }
}

</mosaic_0001>

<llo_original>
// kernel: tpu_custom_call.1
$region0: #{tpu_custom_call.1}
  #allocation0 [shape = 'u32[]', space=smem, size = 0x4, offset = 0x4, fixed_abs, tag = 'smem constant byte address 0x4 - core index']
  #allocation1 [shape = 'u32[72,128]{1,0:T(1,128)}', space=vmem, size = 0x9000, scoped, tag = 'internal scratch']
  #allocation2 [shape = 'f32[1]{0:T(128)S(6)}', space=smem, size = 0x200, scoped, tag = 'scoped memory for tpu_custom_call.1']
  #allocation3 [shape = 'f32[1]{0:T(128)S(6)}', space=smem, size = 0x200, scoped, tag = 'scoped memory for tpu_custom_call.1']
  %s0 = inlined_call_operand.<no memory space> [shape: f32[1], index: 0, kind: input, shape index: {}]
  %s1 = inlined_call_operand.<no memory space> [shape: f32[1], index: 1, kind: input, shape index: {}]
  %s2 = inlined_call_operand.hbm [shape: f32[8,32], index: 2, kind: input, shape index: {}]
  %s3 = inlined_call_operand.hbm [shape: f32[32,64], index: 3, kind: input, shape index: {}]
  %s4 = inlined_call_operand.vmem [shape: f32[1,64], index: 4, kind: input, shape index: {}]
  %s5 = inlined_call_operand.hbm [shape: f32[8,64], index: 5, kind: output, shape index: {}]
  %s6 = sld [smem:[#allocation0]]
  $region50: #{tpu_custom_call.1} parent=0
    _
  %s8 = ssub.s32 1, %s6
  %s9 = scalar_select 0, %s8, %s6
  %10 = sst [smem:[#allocation2]] %s0
  %11 = sst [smem:[#allocation3]] %s1
  $region1: #{tpu_custom_call.1} parent=0
    #allocation4 [shape = 'u8[4096]{0}', space=vmem, size = 0x1000, scoped, tag = 'input window, operand 2, single buffered']
    #allocation5 [shape = 's32[1]{0}', space=sflag, size = 0x4, scoped, tag = 'scoped memory for tpu_custom_call.1']
    #allocation6 [shape = 's32[1]{0}', space=sflag, size = 0x4, scoped, tag = 'scoped memory for tpu_custom_call.1']
    #allocation7 [shape = 'u8[16384]{0}', space=vmem, size = 0x4000, scoped, tag = 'input window, operand 3, single buffered']
    #allocation8 [shape = 's32[1]{0}', space=sflag, size = 0x4, scoped, tag = 'scoped memory for tpu_custom_call.1']
    #allocation9 [shape = 'u8[4096]{0}', space=vmem, size = 0x1000, scoped, tag = 'output window, operand 0, single buffered']
    %12 = vsyncpa [#allocation5], 0
    %13 = vsyncpa [#allocation8], 0
    %14 = vsyncpa [#allocation6], 0
    // Predicated region
    $region2: #{tpu_custom_call.1} parent=1 // pred_check
      _
    $region3: #{tpu_custom_call.1} parent=1 // pred_check_branch
      %16 = sbr.rel (0) target = $region5
    $region4: #{tpu_custom_call.1} parent=1 // pred_region
      _
    $region5: #{tpu_custom_call.1} parent=1 // pred_fallthru
      _
    // Predicated region
    $region6: #{tpu_custom_call.1} parent=1 // pred_check
      _
    $region7: #{tpu_custom_call.1} parent=1 // pred_check_branch
      %18 = sbr.rel (0) target = $region9
    $region8: #{tpu_custom_call.1} parent=1 // pred_region
      _
    $region9: #{tpu_custom_call.1} parent=1 // pred_fallthru
      _
    // Predicated region
    $region10: #{tpu_custom_call.1} parent=1 // pred_check
      _
    $region11: #{tpu_custom_call.1} parent=1 // pred_check_branch
      %20 = sbr.rel (0) target = $region13
    $region12: #{tpu_custom_call.1} parent=1 // pred_region
      %22 = vsyncadd [#allocation5], 0
      %s24 = sshll.u32 %s2, 4
      %s25 = int_to_ptr.hbm [resolvable:$true] %s24
      %s26 = sshll.u32 [#allocation4], 4
      %s27 = int_to_ptr.vmem [resolvable:$true] %s26
      %29 = dma.hbm_to_vmem [thread:$0]  %s25, 128, %s27, [#allocation5]
    $region13: #{tpu_custom_call.1} parent=1 // pred_fallthru
      _
    // Predicated region
    $region14: #{tpu_custom_call.1} parent=1 // pred_check
      _
    $region15: #{tpu_custom_call.1} parent=1 // pred_check_branch
      %31 = sbr.rel (0) target = $region17
    $region16: #{tpu_custom_call.1} parent=1 // pred_region
      %33 = vsyncadd [#allocation8], 0
      %s34 = sshll.u32 %s3, 4
      %s35 = int_to_ptr.hbm [resolvable:$true] %s34
      %s36 = sshll.u32 [#allocation7], 4
      %s37 = int_to_ptr.vmem [resolvable:$true] %s36
      %42 = dma.hbm_to_vmem [thread:$0]  %s35, 512, %s37, [#allocation8], 128, 128, 8
    $region17: #{tpu_custom_call.1} parent=1 // pred_fallthru
      _
    // Predicated region
    $region18: #{tpu_custom_call.1} parent=1 // pred_check
      _
    $region19: #{tpu_custom_call.1} parent=1 // pred_check_branch
      %44 = sbr.rel (0) target = $region21
    $region20: #{tpu_custom_call.1} parent=1 // pred_region
      _
    $region21: #{tpu_custom_call.1} parent=1 // pred_fallthru
      _
    // Predicated region
    $region22: #{tpu_custom_call.1} parent=1 // pred_check
      _
    $region23: #{tpu_custom_call.1} parent=1 // pred_check_branch
      %46 = sbr.rel (0) target = $region25
    $region24: #{tpu_custom_call.1} parent=1 // pred_region
      %48 = dma.done [#allocation5], 128
    $region25: #{tpu_custom_call.1} parent=1 // pred_fallthru
      _
    // Predicated region
    $region26: #{tpu_custom_call.1} parent=1 // pred_check
      _
    $region27: #{tpu_custom_call.1} parent=1 // pred_check_branch
      %50 = sbr.rel (0) target = $region29
    $region28: #{tpu_custom_call.1} parent=1 // pred_region
      %52 = dma.done [#allocation8], 512
    $region29: #{tpu_custom_call.1} parent=1 // pred_fallthru
      _
    %v53 = vld [vmem:[#allocation4] sm:$0xff]
    %v54 = vld [vmem:[#allocation7] sm:$0xff]
    %v55 = vld [vmem:[#allocation7 + $0x8] sm:$0xff]
    %v56 = vld [vmem:[#allocation7 + $0x10] sm:$0xff]
    %v57 = vld [vmem:[#allocation7 + $0x18] sm:$0xff]
    %vm58 = vcmask 261120
    %v60 = vsel %vm58, %v53, 0
    %62 = vmatpush.msra.mxu0 0.0
    %63 = vmatpush.msra.mxu0 0.0
    %64 = vmatpush.msra.mxu0 0.0
    %65 = vmatpush.msra.mxu0 0.0
    %66 = vmatpush.msra.mxu0 0.0
    %67 = vmatpush.msra.mxu0 0.0
    %68 = vmatpush.msra.mxu0 0.0
    %69 = vmatpush.msra.mxu0 0.0
    %70 = vmatpush.msra.mxu0 0.0
    %71 = vmatpush.msra.mxu0 0.0
    %72 = vmatpush.msra.mxu0 0.0
    %73 = vmatpush.msra.mxu0 0.0
    %74 = vmatpush.msra.mxu0 %v57
    %75 = vmatpush.msra.mxu0 %v56
    %76 = vmatpush.msra.mxu0 %v55
    %77 = vmatpush.msra.mxu0 %v54
    %78 = vmatmul.f32.gmra.mxu0 %v60
    %v79 = vpop.f32.mrf.mxu0
    %v80 = vadd.f32 0.0, %v79
    %81 = vdwg.mxu0
    %p82 = scmp.eq.s32.totalorder 0, 0
    // Predicated region
    $region30: #{tpu_custom_call.1} parent=1 // pred_check
      %p83 = pneg %p82
    $region31: #{tpu_custom_call.1} parent=1 // pred_check_branch
      %85 = sbr.rel (%p83) target = $region33
    $region32: #{tpu_custom_call.1} parent=1 // pred_region
      %vm86 = vcmask 523264
      %87 = vst.msk [vmem:[#allocation9] sm:$0xff] %vm86, %v80
    $region33: #{tpu_custom_call.1} parent=1 // pred_fallthru
      _
    %p88 = scmp.gt.s32.totalorder 0, 0
    // Predicated region
    $region34: #{tpu_custom_call.1} parent=1 // pred_check
      %p89 = pneg %p88
    $region35: #{tpu_custom_call.1} parent=1 // pred_check_branch
      %91 = sbr.rel (%p89) target = $region37
    $region36: #{tpu_custom_call.1} parent=1 // pred_region
      %v92 = vld [vmem:[#allocation9] sm:$0xff]
      %v93 = vadd.f32 %v92, %v80
      %vm94 = vcmask 523264
      %95 = vst.msk [vmem:[#allocation9] sm:$0xff] %vm94, %v93
    $region37: #{tpu_custom_call.1} parent=1 // pred_fallthru
      _
    // Predicated region
    $region38: #{tpu_custom_call.1} parent=1 // pred_check
      %p96 = pneg %p82
    $region39: #{tpu_custom_call.1} parent=1 // pred_check_branch
      %98 = sbr.rel (%p96) target = $region41
    $region40: #{tpu_custom_call.1} parent=1 // pred_region
      %s99 = sld [smem:[#allocation3]]
      %v100 = vld [vmem:[%s4] sm:$0x1]
      %v101 = vstv %s99
      %v102 = vmul.f32 %v101, %v100
      %s103 = sld [smem:[#allocation2]]
      %v104 = vld [vmem:[#allocation9] sm:$0xff]
      %v105 = vstv %s103
      %v106 = vmul.f32 %v105, %v104
      %v108 = vperm.slane %v102, 0
      %v110 = vadd.f32 %v106, %v108
      %vm111 = vcmask 523264
      %112 = vst.msk [vmem:[#allocation9] sm:$0xff] %vm111, %v110
    $region41: #{tpu_custom_call.1} parent=1 // pred_fallthru
      _
    // Predicated region
    $region42: #{tpu_custom_call.1} parent=1 // pred_check
      _
    $region43: #{tpu_custom_call.1} parent=1 // pred_check_branch
      %114 = sbr.rel (0) target = $region45
    $region44: #{tpu_custom_call.1} parent=1 // pred_region
      %116 = vsyncadd [#allocation6], 0
      %s118 = sshll.u32 [#allocation9], 4
      %s119 = int_to_ptr.vmem [resolvable:$true] %s118
      %s120 = sshll.u32 %s5, 4
      %s121 = int_to_ptr.hbm [resolvable:$true] %s120
      %123 = dma.vmem_to_hbm [thread:$0]  %s119, 128, %s121, [#allocation6]
    $region45: #{tpu_custom_call.1} parent=1 // pred_fallthru
      _
    // Predicated region
    $region46: #{tpu_custom_call.1} parent=1 // pred_check
      _
    $region47: #{tpu_custom_call.1} parent=1 // pred_check_branch
      %125 = sbr.rel (0) target = $region49
    $region48: #{tpu_custom_call.1} parent=1 // pred_region
      %127 = dma.done [#allocation6], 128
    $region49: #{tpu_custom_call.1} parent=1 // pred_fallthru
      _
    %128 = vsyncpa [#allocation5], 1
    %129 = vsyncpa [#allocation8], 1
    %130 = vsyncpa [#allocation6], 1

</llo_original>
